<compile_context>
chip_gen: v7x
topology: tpu7x:2x2x1
jax: 0.10.0
libtpu: 0.0.40
codegen_flags: <defaults>
</compile_context>

<pallas_src>
import jax
import jax.numpy as jnp
from jax.experimental import pallas as pl
from jax.experimental.pallas import tpu as pltpu


def _basic_block_kernel(x_ref, m1_ref, b1_ref, m2_ref, b2_ref, out_ref):
    """One batch element per grid step, fused (H, W*C) lane-dense layout.

    x_ref  : (1, H, W*Cin)       f32  unpadded input (also the residual path)
    m1_ref : (3, W*Cin, W*Cout)  bf16 banded conv1 weights (BN1 scale folded in), one per ky
    b1_ref : (1, W*Cout)         f32  folded BN1 bias (per-channel, tiled over W)
    m2_ref : (3, W*Cout, W*Cout) bf16 banded conv2 weights (BN2 scale folded in)
    b2_ref : (1, W*Cout)         f32  folded BN2 bias
    out_ref: (1, H, W*Cout)      f32
    """
    _, H, WCin = x_ref.shape
    WCout = out_ref.shape[-1]

    x32 = x_ref[0]                                   # (H, W*Cin) f32, residual path
    xb = x32.astype(jnp.bfloat16)                    # bf16 operands for the MXU

    # ---- conv1 (+BN1 scale): 3 row-matmuls (ky taps) against banded matrices ----
    zrow_in = jnp.zeros((1, WCin), jnp.bfloat16)
    xp = jnp.concatenate([zrow_in, xb, zrow_in], axis=0)     # (H+2, W*Cin), H zero-pad
    acc1 = jnp.zeros((H, WCout), jnp.float32)
    for k in range(3):
        acc1 += jnp.dot(xp[k:k + H], m1_ref[k],
                        preferred_element_type=jnp.float32)

    # fused BN1 bias + ReLU (f32, lane-dense); scale already folded into m1
    h1 = jnp.maximum(acc1 + b1_ref[...], 0.0)

    # ---- conv2 (+BN2 scale): same banded formulation on the intermediate ----
    hb = h1.astype(jnp.bfloat16)
    zrow_mid = jnp.zeros((1, WCout), jnp.bfloat16)
    hp = jnp.concatenate([zrow_mid, hb, zrow_mid], axis=0)   # (H+2, W*Cout)
    acc2 = jnp.zeros((H, WCout), jnp.float32)
    for k in range(3):
        acc2 += jnp.dot(hp[k:k + H], m2_ref[k],
                        preferred_element_type=jnp.float32)

    # ---- BN2 bias + residual add (downsample is None => identity; Cin == Cout) ----
    out_ref[0] = (acc2 + b2_ref[...] + x32).astype(out_ref.dtype)


def _fold_bn(gamma, beta, mean, var, eps=1e-5):
    scale = gamma / jnp.sqrt(var + eps)
    bias = beta - mean * scale
    return scale.astype(jnp.float32), bias.astype(jnp.float32)


def _banded_weights(w_hwio, W):
    """Fold the kx taps and the W zero-padding into banded matmul matrices (f32).

    w_hwio: (3, 3, Cin, Cout)  ->  (3, W*Cin, W*Cout) with
      M[ky, i*Cin + ci, w*Cout + co] = w_hwio[ky, kx, ci, co]  where kx = i - w + 1
      (valid only for 0 <= kx < 3; out-of-band entries are zero = the W padding).
    """
    KH, KW, Cin, Cout = w_hwio.shape
    i_idx = jnp.arange(W)[:, None]                   # input column
    w_idx = jnp.arange(W)[None, :]                   # output column
    kx = i_idx - w_idx + 1                           # (W, W)
    valid = (kx >= 0) & (kx < KW)
    kx_c = jnp.clip(kx, 0, KW - 1)
    taps = w_hwio[:, kx_c]                           # (3, W, W, Cin, Cout)
    taps = jnp.where(valid[None, :, :, None, None], taps, 0.0)
    M = jnp.transpose(taps, (0, 1, 3, 2, 4)).reshape(KH, W * Cin, W * Cout)
    return M.astype(jnp.float32)


@jax.jit
def basic_block_forward(x_nchw, w1, g1, be1, m1, v1, w2, g2, be2, m2, v2):
    """x_nchw: (B, Cin, H, W) float32 (PyTorch layout). Returns (B, Cout, H, W)."""
    B, Cin, H, W = x_nchw.shape
    Cout = w1.shape[0]                               # w1: (Cout, Cin, 3, 3) OIHW
    assert Cin == Cout, "identity residual requires inplanes == planes"

    # NCHW -> NHWC -> fused lane-dense (B, H, W*Cin); single f32 stream into the kernel.
    x_fused = jnp.transpose(x_nchw, (0, 2, 3, 1)).astype(jnp.float32).reshape(B, H, W * Cin)

    # OIHW -> HWIO -> banded f32 matrices (kx + W-padding folded into the contraction).
    w1_hwio = jnp.transpose(w1, (2, 3, 1, 0)).astype(jnp.float32)
    w2_hwio = jnp.transpose(w2, (2, 3, 1, 0)).astype(jnp.float32)
    m1_band = _banded_weights(w1_hwio, W)            # (3, W*Cin,  W*Cout) f32
    m2_band = _banded_weights(w2_hwio, W)            # (3, W*Cout, W*Cout) f32

    # Folded BN params, tiled over W to match the fused lane layout (index = w*C + c).
    s1, b1 = _fold_bn(g1, be1, m1, v1)
    s2, b2 = _fold_bn(g2, be2, m2, v2)
    s1f = jnp.tile(s1.reshape(1, Cout), (1, W))      # (1, W*Cout)
    b1f = jnp.tile(b1.reshape(1, Cout), (1, W))
    s2f = jnp.tile(s2.reshape(1, Cout), (1, W))
    b2f = jnp.tile(b2.reshape(1, Cout), (1, W))

    # Fold the BN scales into the conv weights (f32 fold, then bf16 cast for the MXU).
    m1_bf = (m1_band * s1f[None]).astype(jnp.bfloat16)
    m2_bf = (m2_band * s2f[None]).astype(jnp.bfloat16)

    WCin, WCout = W * Cin, W * Cout

    out_fused = pl.pallas_call(
        _basic_block_kernel,
        out_shape=jax.ShapeDtypeStruct((B, H, WCout), jnp.float32),
        grid_spec=pltpu.PrefetchScalarGridSpec(
            num_scalar_prefetch=0,
            grid=(B,),
            in_specs=[
                pl.BlockSpec((1, H, WCin), lambda b: (b, 0, 0)),
                pl.BlockSpec((3, WCin, WCout), lambda b: (0, 0, 0)),
                pl.BlockSpec((1, WCout), lambda b: (0, 0)),
                pl.BlockSpec((3, WCout, WCout), lambda b: (0, 0, 0)),
                pl.BlockSpec((1, WCout), lambda b: (0, 0)),
            ],
            out_specs=pl.BlockSpec((1, H, WCout), lambda b: (b, 0, 0)),
        ),
        compiler_params=pltpu.CompilerParams(
            dimension_semantics=("parallel",),
            vmem_limit_bytes=32 * 1024 * 1024,
        ),
    )(x_fused, m1_bf, b1f, m2_bf, b2f)

    out_nhwc = out_fused.reshape(B, H, W, Cout)
    return jnp.transpose(out_nhwc, (0, 3, 1, 2))


def _reference_forward(x_nchw, w1, g1, be1, m1, v1, w2, g2, be2, m2, v2):
    """Pure-JAX f32 reference (lax conv) for the correctness check."""
    x = jnp.transpose(x_nchw, (0, 2, 3, 1))
    w1_hwio = jnp.transpose(w1, (2, 3, 1, 0))
    w2_hwio = jnp.transpose(w2, (2, 3, 1, 0))
    dn = ("NHWC", "HWIO", "NHWC")
    s1, b1 = _fold_bn(g1, be1, m1, v1)
    s2, b2 = _fold_bn(g2, be2, m2, v2)
    y = jax.lax.conv_general_dilated(x, w1_hwio, (1, 1), ((1, 1), (1, 1)),
                                     dimension_numbers=dn)
    y = jnp.maximum(y * s1.reshape(1, 1, 1, -1) + b1.reshape(1, 1, 1, -1), 0.0)
    y = jax.lax.conv_general_dilated(y, w2_hwio, (1, 1), ((1, 1), (1, 1)),
                                     dimension_numbers=dn)
    y = y * s2.reshape(1, 1, 1, -1) + b2.reshape(1, 1, 1, -1)
    y = y + x
    return jnp.transpose(y, (0, 3, 1, 2))


if __name__ == "__main__":
    B, C, H, W = 2, 8, 16, 16           # inplanes == planes == 8, stride 1; W*C = 128
    key = jax.random.PRNGKey(0)
    ks = jax.random.split(key, 8)

    x = jax.random.normal(ks[0], (B, C, H, W), jnp.float32)

    # conv1 / bn1 params (deterministic, synthetic)
    w1 = jax.random.normal(ks[1], (C, C, 3, 3), jnp.float32) * 0.1
    g1 = 1.0 + 0.05 * jax.random.normal(ks[2], (C,), jnp.float32)
    be1 = 0.05 * jax.random.normal(ks[3], (C,), jnp.float32)
    m1 = 0.1 * jax.random.normal(ks[4], (C,), jnp.float32)
    v1 = 1.0 + 0.1 * jax.nn.sigmoid(jax.random.normal(ks[5], (C,), jnp.float32))

    # conv2 / bn2 params
    w2 = jax.random.normal(ks[6], (C, C, 3, 3), jnp.float32) * 0.1
    g2 = jnp.ones((C,), jnp.float32)
    be2 = jnp.zeros((C,), jnp.float32)
    m2 = 0.1 * jax.random.normal(ks[7], (C,), jnp.float32)
    v2 = jnp.ones((C,), jnp.float32) * 1.3

    out = basic_block_forward(x, w1, g1, be1, m1, v1, w2, g2, be2, m2, v2)
    out = jax.block_until_ready(out)

    ref = _reference_forward(x, w1, g1, be1, m1, v1, w2, g2, be2, m2, v2)
    assert out.shape == (B, C, H, W)
    # bf16 MXU operands (f32 accumulation) => loosened tolerance vs the f32 reference.
    assert jnp.allclose(out, ref, atol=3e-2, rtol=3e-2), (
        "mismatch vs reference, max abs diff = %e" % float(jnp.max(jnp.abs(out - ref))))

    print("KERNEL_OK")
</pallas_src>

<mosaic_0001>
module attributes {stable_mosaic.version = 11 : i64} {
  func.func @_basic_block_kernel(%arg0: i32, %arg1: memref<1x16x128xf32, #tpu.memory_space<vmem>>, %arg2: memref<3x128x128xbf16, #tpu.memory_space<vmem>>, %arg3: memref<1x128xf32, #tpu.memory_space<vmem>>, %arg4: memref<3x128x128xbf16, #tpu.memory_space<vmem>>, %arg5: memref<1x128xf32, #tpu.memory_space<vmem>>, %arg6: memref<1x16x128xf32, #tpu.memory_space<vmem>>) attributes {dimension_semantics = [#tpu.dimension_semantics<parallel>], iteration_bounds = array<i64: 2>, scalar_prefetch = 0 : i64, scratch_operands = 0 : i64, tpu.core_type = #tpu.core_type<tc>, window_params = [{transform_indices = @transform_0, window_bounds = array<i64: 1, 16, 128>}, {pipeline_mode = #tpu.pipeline_mode<synchronous>, transform_indices = @transform_1, window_bounds = array<i64: 3, 128, 128>}, {pipeline_mode = #tpu.pipeline_mode<synchronous>, transform_indices = @transform_2, window_bounds = array<i64: 1, 128>}, {pipeline_mode = #tpu.pipeline_mode<synchronous>, transform_indices = @transform_3, window_bounds = array<i64: 3, 128, 128>}, {pipeline_mode = #tpu.pipeline_mode<synchronous>, transform_indices = @transform_4, window_bounds = array<i64: 1, 128>}, {transform_indices = @transform_5, window_bounds = array<i64: 1, 16, 128>}]} {
    %c0 = arith.constant 0 : index
    %c0_0 = arith.constant 0 : index
    %c0_1 = arith.constant 0 : index
    %0 = vector.load %arg1[%c0, %c0_0, %c0_1] : memref<1x16x128xf32, #tpu.memory_space<vmem>>, vector<1x16x128xf32>
    %1 = vector.shape_cast %0 : vector<1x16x128xf32> to vector<16x128xf32>
    %2 = arith.truncf %1 : vector<16x128xf32> to vector<16x128xbf16>
    %cst = arith.constant 0.000000e+00 : bf16
    %3 = vector.broadcast %cst : bf16 to vector<1x128xbf16>
    %4 = tpu.concatenate %3, %2, %3 in 0 : vector<1x128xbf16>, vector<16x128xbf16>, vector<1x128xbf16> -> vector<18x128xbf16>
    %cst_2 = arith.constant 0.000000e+00 : f32
    %5 = vector.broadcast %cst_2 : f32 to vector<16x128xf32>
    %6 = vector.extract_strided_slice %4 {offsets = [0, 0], sizes = [16, 128], strides = [1, 1]} : vector<18x128xbf16> to vector<16x128xbf16>
    %c0_3 = arith.constant 0 : index
    %c0_4 = arith.constant 0 : index
    %c0_5 = arith.constant 0 : index
    %7 = vector.load %arg2[%c0_3, %c0_4, %c0_5] : memref<3x128x128xbf16, #tpu.memory_space<vmem>>, vector<1x128x128xbf16>
    %8 = vector.shape_cast %7 : vector<1x128x128xbf16> to vector<128x128xbf16>
    %cst_6 = arith.constant dense<0.000000e+00> : vector<16x128xf32>
    %9 = tpu.matmul %6, %8, %cst_6 {dimension_numbers = #tpu.dot_dimension_numbers<[1], [0], [0], [1], [0, 0, 1, 1], [], []>} : vector<16x128xbf16>, vector<128x128xbf16>, vector<16x128xf32> -> vector<16x128xf32>
    %10 = arith.addf %5, %9 : vector<16x128xf32>
    %11 = vector.extract_strided_slice %4 {offsets = [1, 0], sizes = [16, 128], strides = [1, 1]} : vector<18x128xbf16> to vector<16x128xbf16>
    %c1 = arith.constant 1 : index
    %c0_7 = arith.constant 0 : index
    %c0_8 = arith.constant 0 : index
    %12 = vector.load %arg2[%c1, %c0_7, %c0_8] : memref<3x128x128xbf16, #tpu.memory_space<vmem>>, vector<1x128x128xbf16>
    %13 = vector.shape_cast %12 : vector<1x128x128xbf16> to vector<128x128xbf16>
    %cst_9 = arith.constant dense<0.000000e+00> : vector<16x128xf32>
    %14 = tpu.matmul %11, %13, %cst_9 {dimension_numbers = #tpu.dot_dimension_numbers<[1], [0], [0], [1], [0, 0, 1, 1], [], []>} : vector<16x128xbf16>, vector<128x128xbf16>, vector<16x128xf32> -> vector<16x128xf32>
    %15 = arith.addf %10, %14 : vector<16x128xf32>
    %16 = vector.extract_strided_slice %4 {offsets = [2, 0], sizes = [16, 128], strides = [1, 1]} : vector<18x128xbf16> to vector<16x128xbf16>
    %c2 = arith.constant 2 : index
    %c0_10 = arith.constant 0 : index
    %c0_11 = arith.constant 0 : index
    %17 = vector.load %arg2[%c2, %c0_10, %c0_11] : memref<3x128x128xbf16, #tpu.memory_space<vmem>>, vector<1x128x128xbf16>
    %18 = vector.shape_cast %17 : vector<1x128x128xbf16> to vector<128x128xbf16>
    %cst_12 = arith.constant dense<0.000000e+00> : vector<16x128xf32>
    %19 = tpu.matmul %16, %18, %cst_12 {dimension_numbers = #tpu.dot_dimension_numbers<[1], [0], [0], [1], [0, 0, 1, 1], [], []>} : vector<16x128xbf16>, vector<128x128xbf16>, vector<16x128xf32> -> vector<16x128xf32>
    %20 = arith.addf %15, %19 : vector<16x128xf32>
    %c0_13 = arith.constant 0 : index
    %c0_14 = arith.constant 0 : index
    %21 = vector.load %arg3[%c0_13, %c0_14] : memref<1x128xf32, #tpu.memory_space<vmem>>, vector<1x128xf32>
    %22 = vector.broadcast %21 : vector<1x128xf32> to vector<16x128xf32>
    %23 = arith.addf %20, %22 : vector<16x128xf32>
    %cst_15 = arith.constant 0.000000e+00 : f32
    %24 = vector.broadcast %cst_15 : f32 to vector<16x128xf32>
    %25 = arith.maximumf %23, %24 : vector<16x128xf32>
    %26 = arith.truncf %25 : vector<16x128xf32> to vector<16x128xbf16>
    %cst_16 = arith.constant 0.000000e+00 : bf16
    %27 = vector.broadcast %cst_16 : bf16 to vector<1x128xbf16>
    %28 = tpu.concatenate %27, %26, %27 in 0 : vector<1x128xbf16>, vector<16x128xbf16>, vector<1x128xbf16> -> vector<18x128xbf16>
    %cst_17 = arith.constant 0.000000e+00 : f32
    %29 = vector.broadcast %cst_17 : f32 to vector<16x128xf32>
    %30 = vector.extract_strided_slice %28 {offsets = [0, 0], sizes = [16, 128], strides = [1, 1]} : vector<18x128xbf16> to vector<16x128xbf16>
    %c0_18 = arith.constant 0 : index
    %c0_19 = arith.constant 0 : index
    %c0_20 = arith.constant 0 : index
    %31 = vector.load %arg4[%c0_18, %c0_19, %c0_20] : memref<3x128x128xbf16, #tpu.memory_space<vmem>>, vector<1x128x128xbf16>
    %32 = vector.shape_cast %31 : vector<1x128x128xbf16> to vector<128x128xbf16>
    %cst_21 = arith.constant dense<0.000000e+00> : vector<16x128xf32>
    %33 = tpu.matmul %30, %32, %cst_21 {dimension_numbers = #tpu.dot_dimension_numbers<[1], [0], [0], [1], [0, 0, 1, 1], [], []>} : vector<16x128xbf16>, vector<128x128xbf16>, vector<16x128xf32> -> vector<16x128xf32>
    %34 = arith.addf %29, %33 : vector<16x128xf32>
    %35 = vector.extract_strided_slice %28 {offsets = [1, 0], sizes = [16, 128], strides = [1, 1]} : vector<18x128xbf16> to vector<16x128xbf16>
    %c1_22 = arith.constant 1 : index
    %c0_23 = arith.constant 0 : index
    %c0_24 = arith.constant 0 : index
    %36 = vector.load %arg4[%c1_22, %c0_23, %c0_24] : memref<3x128x128xbf16, #tpu.memory_space<vmem>>, vector<1x128x128xbf16>
    %37 = vector.shape_cast %36 : vector<1x128x128xbf16> to vector<128x128xbf16>
    %cst_25 = arith.constant dense<0.000000e+00> : vector<16x128xf32>
    %38 = tpu.matmul %35, %37, %cst_25 {dimension_numbers = #tpu.dot_dimension_numbers<[1], [0], [0], [1], [0, 0, 1, 1], [], []>} : vector<16x128xbf16>, vector<128x128xbf16>, vector<16x128xf32> -> vector<16x128xf32>
    %39 = arith.addf %34, %38 : vector<16x128xf32>
    %40 = vector.extract_strided_slice %28 {offsets = [2, 0], sizes = [16, 128], strides = [1, 1]} : vector<18x128xbf16> to vector<16x128xbf16>
    %c2_26 = arith.constant 2 : index
    %c0_27 = arith.constant 0 : index
    %c0_28 = arith.constant 0 : index
    %41 = vector.load %arg4[%c2_26, %c0_27, %c0_28] : memref<3x128x128xbf16, #tpu.memory_space<vmem>>, vector<1x128x128xbf16>
    %42 = vector.shape_cast %41 : vector<1x128x128xbf16> to vector<128x128xbf16>
    %cst_29 = arith.constant dense<0.000000e+00> : vector<16x128xf32>
    %43 = tpu.matmul %40, %42, %cst_29 {dimension_numbers = #tpu.dot_dimension_numbers<[1], [0], [0], [1], [0, 0, 1, 1], [], []>} : vector<16x128xbf16>, vector<128x128xbf16>, vector<16x128xf32> -> vector<16x128xf32>
    %44 = arith.addf %39, %43 : vector<16x128xf32>
    %c0_30 = arith.constant 0 : index
    %c0_31 = arith.constant 0 : index
    %45 = vector.load %arg5[%c0_30, %c0_31] : memref<1x128xf32, #tpu.memory_space<vmem>>, vector<1x128xf32>
    %46 = vector.broadcast %45 : vector<1x128xf32> to vector<16x128xf32>
    %47 = arith.addf %44, %46 : vector<16x128xf32>
    %48 = arith.addf %47, %1 : vector<16x128xf32>
    %c0_32 = arith.constant 0 : index
    %c0_33 = arith.constant 0 : index
    %c0_34 = arith.constant 0 : index
    %49 = vector.load %arg6[%c0_32, %c0_33, %c0_34] : memref<1x16x128xf32, #tpu.memory_space<vmem>>, vector<1x16x128xf32>
    %50 = vector.shape_cast %49 : vector<1x16x128xf32> to vector<16x128xf32>
    %51 = vector.shape_cast %48 : vector<16x128xf32> to vector<1x16x128xf32>
    tpu.vector_store %arg6[%c0_32, %c0_33, %c0_34], %51 {strides = array<i32>} : memref<1x16x128xf32, #tpu.memory_space<vmem>>, vector<1x16x128xf32>,
    return
  }
  func.func @transform_0(%arg0: i32) -> (i32, i32, i32) {
    %c0_i32 = arith.constant 0 : i32
    %c0_i32_0 = arith.constant 0 : i32
    %c0_i32_1 = arith.constant 0 : i32
    return %arg0, %c0_i32, %c0_i32_0 : i32, i32, i32
  }
  func.func @transform_1(%arg0: i32) -> (i32, i32, i32) {
    %c0_i32 = arith.constant 0 : i32
    %c0_i32_0 = arith.constant 0 : i32
    %c0_i32_1 = arith.constant 0 : i32
    %c0_i32_2 = arith.constant 0 : i32
    return %c0_i32, %c0_i32_0, %c0_i32_1 : i32, i32, i32
  }
  func.func @transform_2(%arg0: i32) -> (i32, i32) {
    %c0_i32 = arith.constant 0 : i32
    %c0_i32_0 = arith.constant 0 : i32
    %c0_i32_1 = arith.constant 0 : i32
    return %c0_i32, %c0_i32_0 : i32, i32
  }
  func.func @transform_3(%arg0: i32) -> (i32, i32, i32) {
    %c0_i32 = arith.constant 0 : i32
    %c0_i32_0 = arith.constant 0 : i32
    %c0_i32_1 = arith.constant 0 : i32
    %c0_i32_2 = arith.constant 0 : i32
    return %c0_i32, %c0_i32_0, %c0_i32_1 : i32, i32, i32
  }
  func.func @transform_4(%arg0: i32) -> (i32, i32) {
    %c0_i32 = arith.constant 0 : i32
    %c0_i32_0 = arith.constant 0 : i32
    %c0_i32_1 = arith.constant 0 : i32
    return %c0_i32, %c0_i32_0 : i32, i32
  }
  func.func @transform_5(%arg0: i32) -> (i32, i32, i32) {
    %c0_i32 = arith.constant 0 : i32
    %c0_i32_0 = arith.constant 0 : i32
    %c0_i32_1 = arith.constant 0 : i32
    return %arg0, %c0_i32, %c0_i32_0 : i32, i32, i32
  }
}

</mosaic_0001>

<llo_original>
// kernel: basic_block_forward.1
$region0: #{basic_block_forward.1}
  #allocation0 [shape = 'u32[]', space=smem, size = 0x4, offset = 0x4, fixed_abs, tag = 'smem constant byte address 0x4 - core index']
  #allocation1 [shape = 'u32[144,128]{1,0:T(1,128)}', space=vmem, size = 0x12000, scoped, tag = 'internal scratch']
  %s0 = inlined_call_operand.vmem [shape: f32[2,16,128], index: 0, kind: input, shape index: {}]
  %s1 = inlined_call_operand.vmem [shape: bf16[3,128,128], index: 1, kind: input, shape index: {}]
  %s2 = inlined_call_operand.vmem [shape: f32[1,128], index: 2, kind: input, shape index: {}]
  %s3 = inlined_call_operand.vmem [shape: bf16[3,128,128], index: 3, kind: input, shape index: {}]
  %s4 = inlined_call_operand.vmem [shape: f32[1,128], index: 4, kind: input, shape index: {}]
  %s5 = inlined_call_operand.vmem [shape: f32[2,16,128], index: 5, kind: output, shape index: {}]
  %s6 = sld [smem:[#allocation0]]
  $region53: #{basic_block_forward.1} parent=0
    _
  %s8 = ssub.s32 1, %s6
  %s9 = scalar_select 0, %s8, %s6
  loop: start=0, step=1, limit=4
  $region2: #{basic_block_forward.1} parent=0 // loop_pre_header
    _
  $region3: #{basic_block_forward.1} parent=0 // loop_header
    %s11 = sphi 0, %s15
    %p12 = scmp.ge.s32.totalorder %s11, 4
    %s21 = sphi 0, %s23
    %s24 = sphi 0, %s21
    %s25 = sphi 0, %s24
    %s41 = sphi 0, %s25
    %s45 = sphi 0, %s45
    %s47 = sphi 0, %s45
    %s48 = sphi 0, %s47
    %s62 = sphi 0, %s48
    %s66 = sphi 0, %s66
    %s68 = sphi 0, %s66
    %s69 = sphi 0, %s68
    %s83 = sphi 0, %s69
    %s87 = sphi 0, %s87
    %s89 = sphi 0, %s87
    %s90 = sphi 0, %s89
    %s104 = sphi 0, %s90
    %s108 = sphi 0, %s108
    %s110 = sphi 0, %s108
    %s111 = sphi 0, %s110
    %s125 = sphi 0, %s111
    %s131 = sphi 0, %s133
    %s134 = sphi 0, %s131
    %s135 = sphi 0, %s134
    %s151 = sphi 0, %s135
  $region4: #{basic_block_forward.1} parent=0 // loop_header_branch
    %14 = sbr.rel (%p12) target = $region8
  $region5: #{basic_block_forward.1} parent=0 // loop_body
    %s16 = ssub.s32 %s11, 1
    %s17 = ssub.s32 %s11, 2
    %s18 = sadd.s32 %s11, 1
    %s19 = ssub.s32 %s11, %s18
    %p20 = scmp.eq.s32.totalorder %s19, 0
    %s22 = sadd.s32 %s21, 1
    %s23 = scalar_select %p20, %s21, %s22
    %p26 = pneg %p20
    %p27 = scmp.eq.s32.totalorder %s11, 1
    %p28 = por %p26, %p27
    %p29 = scmp.ne.s32.totalorder %s21, %s24
    %p30 = scmp.eq.s32.totalorder %s11, 0
    %p31 = por %p29, %p30
    %p32 = scmp.ne.s32.totalorder %s21, %s24
    %p33 = scmp.eq.s32.totalorder %s16, 1
    %p34 = por %p32, %p33
    %p35 = scmp.ne.s32.totalorder %s24, %s25
    %p36 = scmp.eq.s32.totalorder %s16, 0
    %p37 = por %p35, %p36
    %p38 = scmp.ne.s32.totalorder %s24, %s25
    %p39 = scmp.eq.s32.totalorder %s17, 1
    %p40 = por %p38, %p39
    %p42 = scmp.ne.s32.totalorder %s25, %s41
    %p43 = scmp.eq.s32.totalorder %s17, 0
    %p44 = por %p42, %p43
    %s46 = sadd.s32 %s45, 1
    %p49 = scmp.eq.s32.totalorder %s11, 1
    %p50 = scmp.ne.s32.totalorder %s45, %s47
    %p51 = scmp.eq.s32.totalorder %s11, 0
    %p52 = por %p50, %p51
    %p53 = scmp.ne.s32.totalorder %s45, %s47
    %p54 = scmp.eq.s32.totalorder %s16, 1
    %p55 = por %p53, %p54
    %p56 = scmp.ne.s32.totalorder %s47, %s48
    %p57 = scmp.eq.s32.totalorder %s16, 0
    %p58 = por %p56, %p57
    %p59 = scmp.ne.s32.totalorder %s47, %s48
    %p60 = scmp.eq.s32.totalorder %s17, 1
    %p61 = por %p59, %p60
    %p63 = scmp.ne.s32.totalorder %s48, %s62
    %p64 = scmp.eq.s32.totalorder %s17, 0
    %p65 = por %p63, %p64
    %s67 = sadd.s32 %s66, 1
    %p70 = scmp.eq.s32.totalorder %s11, 1
    %p71 = scmp.ne.s32.totalorder %s66, %s68
    %p72 = scmp.eq.s32.totalorder %s11, 0
    %p73 = por %p71, %p72
    %p74 = scmp.ne.s32.totalorder %s66, %s68
    %p75 = scmp.eq.s32.totalorder %s16, 1
    %p76 = por %p74, %p75
    %p77 = scmp.ne.s32.totalorder %s68, %s69
    %p78 = scmp.eq.s32.totalorder %s16, 0
    %p79 = por %p77, %p78
    %p80 = scmp.ne.s32.totalorder %s68, %s69
    %p81 = scmp.eq.s32.totalorder %s17, 1
    %p82 = por %p80, %p81
    %p84 = scmp.ne.s32.totalorder %s69, %s83
    %p85 = scmp.eq.s32.totalorder %s17, 0
    %p86 = por %p84, %p85
    %s88 = sadd.s32 %s87, 1
    %p91 = scmp.eq.s32.totalorder %s11, 1
    %p92 = scmp.ne.s32.totalorder %s87, %s89
    %p93 = scmp.eq.s32.totalorder %s11, 0
    %p94 = por %p92, %p93
    %p95 = scmp.ne.s32.totalorder %s87, %s89
    %p96 = scmp.eq.s32.totalorder %s16, 1
    %p97 = por %p95, %p96
    %p98 = scmp.ne.s32.totalorder %s89, %s90
    %p99 = scmp.eq.s32.totalorder %s16, 0
    %p100 = por %p98, %p99
    %p101 = scmp.ne.s32.totalorder %s89, %s90
    %p102 = scmp.eq.s32.totalorder %s17, 1
    %p103 = por %p101, %p102
    %p105 = scmp.ne.s32.totalorder %s90, %s104
    %p106 = scmp.eq.s32.totalorder %s17, 0
    %p107 = por %p105, %p106
    %s109 = sadd.s32 %s108, 1
    %p112 = scmp.eq.s32.totalorder %s11, 1
    %p113 = scmp.ne.s32.totalorder %s108, %s110
    %p114 = scmp.eq.s32.totalorder %s11, 0
    %p115 = por %p113, %p114
    %p116 = scmp.ne.s32.totalorder %s108, %s110
    %p117 = scmp.eq.s32.totalorder %s16, 1
    %p118 = por %p116, %p117
    %p119 = scmp.ne.s32.totalorder %s110, %s111
    %p120 = scmp.eq.s32.totalorder %s16, 0
    %p121 = por %p119, %p120
    %p122 = scmp.ne.s32.totalorder %s110, %s111
    %p123 = scmp.eq.s32.totalorder %s17, 1
    %p124 = por %p122, %p123
    %p126 = scmp.ne.s32.totalorder %s111, %s125
    %p127 = scmp.eq.s32.totalorder %s17, 0
    %p128 = por %p126, %p127
    %s129 = ssub.s32 %s11, %s18
    %p130 = scmp.eq.s32.totalorder %s129, 0
    %s132 = sadd.s32 %s131, 1
    %s133 = scalar_select %p130, %s131, %s132
    %p136 = pneg %p130
    %p137 = scmp.eq.s32.totalorder %s11, 1
    %p138 = por %p136, %p137
    %p139 = scmp.ne.s32.totalorder %s131, %s134
    %p140 = scmp.eq.s32.totalorder %s11, 0
    %p141 = por %p139, %p140
    %p142 = scmp.ne.s32.totalorder %s131, %s134
    %p143 = scmp.eq.s32.totalorder %s16, 1
    %p144 = por %p142, %p143
    %p145 = scmp.ne.s32.totalorder %s134, %s135
    %p146 = scmp.eq.s32.totalorder %s16, 0
    %p147 = por %p145, %p146
    %p148 = scmp.ne.s32.totalorder %s134, %s135
    %p149 = scmp.eq.s32.totalorder %s17, 1
    %p150 = por %p148, %p149
    %p152 = scmp.ne.s32.totalorder %s135, %s151
    %p153 = scmp.eq.s32.totalorder %s17, 0
    %p154 = por %p152, %p153
    %p155 = scmp.le.s32.totalorder 1, %s11
    %p156 = scmp.lt.s32.totalorder %s11, 3
    %p157 = pnand %p155, %p156
    %p158 = pneg %p157
    // Predicated region
    $region9: #{basic_block_forward.1} parent=5 // pred_check
      _
    $region10: #{basic_block_forward.1} parent=5 // pred_check_branch
      %160 = sbr.rel (%p157) target = $region12
    $region11: #{basic_block_forward.1} parent=5 // pred_region
      %s161 = ssub.s32 %s11, 1
      // Predicated region
      $region13: #{basic_block_forward.1} parent=11 // pred_check
        %p162 = pneg %p58
      $region14: #{basic_block_forward.1} parent=11 // pred_check_branch
        %164 = sbr.rel (%p162) target = $region16
      $region15: #{basic_block_forward.1} parent=11 // pred_region
        _
      $region16: #{basic_block_forward.1} parent=11 // pred_fallthru
        _
      // Predicated region
      $region17: #{basic_block_forward.1} parent=11 // pred_check
        %p165 = pneg %p79
      $region18: #{basic_block_forward.1} parent=11 // pred_check_branch
        %167 = sbr.rel (%p165) target = $region20
      $region19: #{basic_block_forward.1} parent=11 // pred_region
        _
      $region20: #{basic_block_forward.1} parent=11 // pred_fallthru
        _
      // Predicated region
      $region21: #{basic_block_forward.1} parent=11 // pred_check
        %p168 = pneg %p100
      $region22: #{basic_block_forward.1} parent=11 // pred_check_branch
        %170 = sbr.rel (%p168) target = $region24
      $region23: #{basic_block_forward.1} parent=11 // pred_region
        _
      $region24: #{basic_block_forward.1} parent=11 // pred_fallthru
        _
      // Predicated region
      $region25: #{basic_block_forward.1} parent=11 // pred_check
        %p171 = pneg %p121
      $region26: #{basic_block_forward.1} parent=11 // pred_check_branch
        %173 = sbr.rel (%p171) target = $region28
      $region27: #{basic_block_forward.1} parent=11 // pred_region
        _
      $region28: #{basic_block_forward.1} parent=11 // pred_fallthru
        _
    $region12: #{basic_block_forward.1} parent=5 // pred_fallthru
      _
    %p174 = scmp.lt.s32.totalorder %s11, 2
    // Predicated region
    $region29: #{basic_block_forward.1} parent=5 // pred_check
      %p175 = pneg %p174
    $region30: #{basic_block_forward.1} parent=5 // pred_check_branch
      %177 = sbr.rel (%p175) target = $region32
    $region31: #{basic_block_forward.1} parent=5 // pred_region
      // Predicated region
      $region33: #{basic_block_forward.1} parent=31 // pred_check
        %p178 = pneg %p31
      $region34: #{basic_block_forward.1} parent=31 // pred_check_branch
        %180 = sbr.rel (%p178) target = $region36
      $region35: #{basic_block_forward.1} parent=31 // pred_region
        %p181 = scmp.lt.s32.totalorder %s11, 1
        %s182 = scalar_select %p181, %s11, 1
        %s183 = smul.addr %s182, 2
        %s184 = smul.addr %s183, 8
        %s185 = scalar_lea.vmem %s0, %s184
      $region36: #{basic_block_forward.1} parent=31 // pred_fallthru
        _
    $region32: #{basic_block_forward.1} parent=5 // pred_fallthru
      _
    %p186 = scmp.le.s32.totalorder 1, %s11
    %p187 = scmp.lt.s32.totalorder %s11, 3
    %p188 = pnand %p186, %p187
    %p189 = pneg %p188
    // Predicated region
    $region37: #{basic_block_forward.1} parent=5 // pred_check
      _
    $region38: #{basic_block_forward.1} parent=5 // pred_check_branch
      %191 = sbr.rel (%p188) target = $region40
    $region39: #{basic_block_forward.1} parent=5 // pred_region
      %s192 = ssub.s32 %s11, 1
      %p193 = scmp.lt.s32.totalorder %s16, 1
      %s194 = scalar_select %p193, %s16, 1
      %s195 = smul.addr %s194, 2
      %s196 = smul.addr %s195, 8
      %s197 = scalar_lea.vmem %s0, %s196
      %p198 = pneg %p37
      %p199 = pneg %p34
      %p200 = pneg %p58
      %p201 = pneg %p55
      %p202 = pneg %p79
      %p203 = pneg %p76
      %p204 = pneg %p100
      %p205 = pneg %p97
      %p206 = pneg %p121
      %p207 = pneg %p118
      %p208 = pneg %p147
      %p209 = pneg %p144
      %p210 = scmp.lt.s32.totalorder %s16, 1
      %s211 = scalar_select %p210, %s16, 1
      %s212 = smul.addr %s211, 2
      %s213 = smul.addr %s212, 8
      %s214 = scalar_lea.vmem %s5, %s213
      %p215 = scmp.lt.s32.totalorder %s16, 1
      %s216 = scalar_select %p215, %s16, 1
      %s217 = smul.addr %s216, 2
      %s218 = smul.addr %s217, 8
      %s219 = scalar_lea.vmem %s0, %s218
      %p220 = scmp.lt.s32.totalorder %s16, 1
      %s221 = scalar_select %p220, %s16, 1
      %s222 = smul.addr %s221, 2
      %s223 = smul.addr %s222, 8
      %s224 = scalar_lea.vmem %s5, %s223
      %v226 = vld [vmem:[%s219] sm:$0xff]
      %v227 = vld [vmem:[%s219 + $0x8] sm:$0xff]
      %v228 = vpack.c.bf16 %v227, %v226
      %v230 = vshrl.u32 %v228, 16
      %v232 = vrot.slane %v230, 7
      %v233 = vshll.u32 %v228, 16
      %v235 = vor.u32 %v232, %v233
      %vm238 = vcmask 1040384
      %vm239 = vsmask.f32 256
      %vm240 = vmand %vm238, %vm239
      %v241 = vsel %vm240, 0, %v235
      %v242 = vsel %vm240, %v232, 0
      %v243 = vld [vmem:[%s1] sm:$0xf]
      %v244 = vld [vmem:[%s1 + $0x4] sm:$0xf]
      %v245 = vld [vmem:[%s1 + $0x8] sm:$0xf]
      %v246 = vld [vmem:[%s1 + $0xc] sm:$0xf]
      %v247 = vld [vmem:[%s1 + $0x10] sm:$0xf]
      %v248 = vld [vmem:[%s1 + $0x14] sm:$0xf]
      %v249 = vld [vmem:[%s1 + $0x18] sm:$0xf]
      %v250 = vld [vmem:[%s1 + $0x1c] sm:$0xf]
      %v251 = vld [vmem:[%s1 + $0x20] sm:$0xf]
      %v252 = vld [vmem:[%s1 + $0x24] sm:$0xf]
      %v253 = vld [vmem:[%s1 + $0x28] sm:$0xf]
      %v254 = vld [vmem:[%s1 + $0x2c] sm:$0xf]
      %v255 = vld [vmem:[%s1 + $0x30] sm:$0xf]
      %v256 = vld [vmem:[%s1 + $0x34] sm:$0xf]
      %v257 = vld [vmem:[%s1 + $0x38] sm:$0xf]
      %v258 = vld [vmem:[%s1 + $0x3c] sm:$0xf]
      %s259 = scalar_lea.vmem %s1, 64
      %v260 = vld [vmem:[%s259] sm:$0xf]
      %v261 = vld [vmem:[%s259 + $0x4] sm:$0xf]
      %v262 = vld [vmem:[%s259 + $0x8] sm:$0xf]
      %v263 = vld [vmem:[%s259 + $0xc] sm:$0xf]
      %v264 = vld [vmem:[%s259 + $0x10] sm:$0xf]
      %v265 = vld [vmem:[%s259 + $0x14] sm:$0xf]
      %v266 = vld [vmem:[%s259 + $0x18] sm:$0xf]
      %v267 = vld [vmem:[%s259 + $0x1c] sm:$0xf]
      %v268 = vld [vmem:[%s259 + $0x20] sm:$0xf]
      %v269 = vld [vmem:[%s259 + $0x24] sm:$0xf]
      %v270 = vld [vmem:[%s259 + $0x28] sm:$0xf]
      %v271 = vld [vmem:[%s259 + $0x2c] sm:$0xf]
      %v272 = vld [vmem:[%s259 + $0x30] sm:$0xf]
      %v273 = vld [vmem:[%s259 + $0x34] sm:$0xf]
      %v274 = vld [vmem:[%s259 + $0x38] sm:$0xf]
      %v275 = vld [vmem:[%s259 + $0x3c] sm:$0xf]
      %vm276 = vsmask.f32 7424
      %v278 = vshrl.u32 %v241, 16
      %v280 = vshll.u32 %v241, 16
      %v282 = vrot.slane %v280, 1
      %v283 = vor.u32 %v278, %v282
      %v285 = vshll.u32 %v242, 16
      %v287 = vrot.slane %v285, 1
      %v288 = vsel %vm276, %v283, %v287
      %v306 = vunpack.c.l.b16 %v260
      %v307 = vunpack.c.l.b16 %v261
      %v308 = vunpack.c.l.b16 %v262
      %v309 = vunpack.c.l.b16 %v263
      %v310 = vunpack.c.l.b16 %v264
      %v311 = vunpack.c.l.b16 %v265
      %v312 = vunpack.c.l.b16 %v266
      %v313 = vunpack.c.l.b16 %v267
      %v314 = vunpack.c.l.b16 %v268
      %v315 = vunpack.c.l.b16 %v269
      %v316 = vunpack.c.l.b16 %v270
      %v317 = vunpack.c.l.b16 %v271
      %v318 = vunpack.c.l.b16 %v272
      %v319 = vunpack.c.l.b16 %v273
      %v320 = vunpack.c.l.b16 %v274
      %v321 = vunpack.c.l.b16 %v275
      %v322 = vpack.c.b16 %v307, %v306
      %v323 = vpack.c.b16 %v309, %v308
      %v324 = vpack.c.b16 %v311, %v310
      %v325 = vpack.c.b16 %v313, %v312
      %v326 = vpack.c.b16 %v315, %v314
      %v327 = vpack.c.b16 %v317, %v316
      %v328 = vpack.c.b16 %v319, %v318
      %v329 = vpack.c.b16 %v321, %v320
      %338 = vmatprep.subr.bf16.mxu0 0
      %339 = vmatpush1.bf16.msra.mxu0 %v322
      %340 = vmatprep.subr.bf16.mxu0 0
      %341 = vmatpush1.bf16.msra.mxu0 %v323
      %342 = vmatprep.subr.bf16.mxu0 0
      %343 = vmatpush1.bf16.msra.mxu0 %v324
      %344 = vmatprep.subr.bf16.mxu0 0
      %345 = vmatpush1.bf16.msra.mxu0 %v325
      %346 = vmatprep.subr.bf16.mxu0 0
      %347 = vmatpush1.bf16.msra.mxu0 %v326
      %348 = vmatprep.subr.bf16.mxu0 0
      %349 = vmatpush1.bf16.msra.mxu0 %v327
      %350 = vmatprep.subr.bf16.mxu0 0
      %351 = vmatpush1.bf16.msra.mxu0 %v328
      %352 = vmatprep.subr.bf16.mxu0 0
      %353 = vmatpush1.bf16.msra.mxu0 %v329
      %354 = vmatprep.subr.bf16.mxu0 0
      %355 = vmatpush1.bf16.msra.mxu0 0
      %356 = vmatprep.subr.bf16.mxu0 0
      %357 = vmatpush1.bf16.msra.mxu0 0
      %358 = vmatprep.subr.bf16.mxu0 0
      %359 = vmatpush1.bf16.msra.mxu0 0
      %360 = vmatprep.subr.bf16.mxu0 0
      %361 = vmatpush1.bf16.msra.mxu0 0
      %362 = vmatprep.subr.bf16.mxu0 0
      %363 = vmatpush1.bf16.msra.mxu0 0
      %364 = vmatprep.subr.bf16.mxu0 0
      %365 = vmatpush1.bf16.msra.mxu0 0
      %366 = vmatprep.subr.bf16.mxu0 0
      %367 = vmatpush1.bf16.msra.mxu0 0
      %368 = vmatprep.subr.bf16.mxu0 0
      %369 = vmatpush1.bf16.msra.mxu0 0
      %370 = vmatprep.mubr.bf16.mxu0 0
      %371 = vmatmul.mubr.bf16.gmra.mrb[0].mxu0 %v288
      %v372 = vpop.f32.mrb[0].mxu0
      %v373 = vadd.f32 0.0, %v372
      %v374 = vpop.f32.mrb[0].mxu0
      %v375 = vpop.f32.mrb[0].mxu0
      %v376 = vadd.f32 0.0, %v375
      %v377 = vpop.f32.mrb[0].mxu0
      %378 = vdwg.mxu0
      %v395 = vunpack.c.l.b16 %v243
      %v396 = vunpack.c.l.b16 %v244
      %v397 = vunpack.c.l.b16 %v245
      %v398 = vunpack.c.l.b16 %v246
      %v399 = vunpack.c.l.b16 %v247
      %v400 = vunpack.c.l.b16 %v248
      %v401 = vunpack.c.l.b16 %v249
      %v402 = vunpack.c.l.b16 %v250
      %v403 = vunpack.c.l.b16 %v251
      %v404 = vunpack.c.l.b16 %v252
      %v405 = vunpack.c.l.b16 %v253
      %v406 = vunpack.c.l.b16 %v254
      %v407 = vunpack.c.l.b16 %v255
      %v408 = vunpack.c.l.b16 %v256
      %v409 = vunpack.c.l.b16 %v257
      %v410 = vunpack.c.l.b16 %v258
      %v411 = vpack.c.b16 %v396, %v395
      %v412 = vpack.c.b16 %v398, %v397
      %v413 = vpack.c.b16 %v400, %v399
      %v414 = vpack.c.b16 %v402, %v401
      %v415 = vpack.c.b16 %v404, %v403
      %v416 = vpack.c.b16 %v406, %v405
      %v417 = vpack.c.b16 %v408, %v407
      %v418 = vpack.c.b16 %v410, %v409
      %427 = vmatprep.subr.bf16.mxu0 0
      %428 = vmatpush1.bf16.msra.mxu0 %v411
      %429 = vmatprep.subr.bf16.mxu0 0
      %430 = vmatpush1.bf16.msra.mxu0 %v412
      %431 = vmatprep.subr.bf16.mxu0 0
      %432 = vmatpush1.bf16.msra.mxu0 %v413
      %433 = vmatprep.subr.bf16.mxu0 0
      %434 = vmatpush1.bf16.msra.mxu0 %v414
      %435 = vmatprep.subr.bf16.mxu0 0
      %436 = vmatpush1.bf16.msra.mxu0 %v415
      %437 = vmatprep.subr.bf16.mxu0 0
      %438 = vmatpush1.bf16.msra.mxu0 %v416
      %439 = vmatprep.subr.bf16.mxu0 0
      %440 = vmatpush1.bf16.msra.mxu0 %v417
      %441 = vmatprep.subr.bf16.mxu0 0
      %442 = vmatpush1.bf16.msra.mxu0 %v418
      %443 = vmatprep.subr.bf16.mxu0 0
      %444 = vmatpush1.bf16.msra.mxu0 0
      %445 = vmatprep.subr.bf16.mxu0 0
      %446 = vmatpush1.bf16.msra.mxu0 0
      %447 = vmatprep.subr.bf16.mxu0 0
      %448 = vmatpush1.bf16.msra.mxu0 0
      %449 = vmatprep.subr.bf16.mxu0 0
      %450 = vmatpush1.bf16.msra.mxu0 0
      %451 = vmatprep.subr.bf16.mxu0 0
      %452 = vmatpush1.bf16.msra.mxu0 0
      %453 = vmatprep.subr.bf16.mxu0 0
      %454 = vmatpush1.bf16.msra.mxu0 0
      %455 = vmatprep.subr.bf16.mxu0 0
      %456 = vmatpush1.bf16.msra.mxu0 0
      %457 = vmatprep.subr.bf16.mxu0 0
      %458 = vmatpush1.bf16.msra.mxu0 0
      %459 = vmatprep.mubr.bf16.mxu0 0
      %460 = vmatmul.mubr.bf16.gmra.mrb[0].mxu0 %v241
      %v461 = vpop.f32.mrb[0].mxu0
      %v462 = vadd.f32 %v373, %v461
      %v463 = vpop.f32.mrb[0].mxu0
      %v464 = vpop.f32.mrb[0].mxu0
      %v465 = vadd.f32 %v376, %v464
      %v466 = vpop.f32.mrb[0].mxu0
      %467 = vdwg.mxu0
      %s468 = scalar_lea.vmem %s1, 128
      %v469 = vld [vmem:[%s468] sm:$0xf]
      %v470 = vld [vmem:[%s468 + $0x4] sm:$0xf]
      %v471 = vld [vmem:[%s468 + $0x8] sm:$0xf]
      %v472 = vld [vmem:[%s468 + $0xc] sm:$0xf]
      %v473 = vld [vmem:[%s468 + $0x10] sm:$0xf]
      %v474 = vld [vmem:[%s468 + $0x14] sm:$0xf]
      %v475 = vld [vmem:[%s468 + $0x18] sm:$0xf]
      %v476 = vld [vmem:[%s468 + $0x1c] sm:$0xf]
      %v477 = vld [vmem:[%s468 + $0x20] sm:$0xf]
      %v478 = vld [vmem:[%s468 + $0x24] sm:$0xf]
      %v479 = vld [vmem:[%s468 + $0x28] sm:$0xf]
      %v480 = vld [vmem:[%s468 + $0x2c] sm:$0xf]
      %v481 = vld [vmem:[%s468 + $0x30] sm:$0xf]
      %v482 = vld [vmem:[%s468 + $0x34] sm:$0xf]
      %v483 = vld [vmem:[%s468 + $0x38] sm:$0xf]
      %v484 = vld [vmem:[%s468 + $0x3c] sm:$0xf]
      %vm487 = vcmask 1046528
      %v488 = vrot.slane %v241, 1
      %v489 = vrot.slane %v242, 1
      %v490 = vsel %vm487, %v488, %v489
      %v508 = vunpack.c.l.b16 %v469
      %v509 = vunpack.c.l.b16 %v470
      %v510 = vunpack.c.l.b16 %v471
      %v511 = vunpack.c.l.b16 %v472
      %v512 = vunpack.c.l.b16 %v473
      %v513 = vunpack.c.l.b16 %v474
      %v514 = vunpack.c.l.b16 %v475
      %v515 = vunpack.c.l.b16 %v476
      %v516 = vunpack.c.l.b16 %v477
      %v517 = vunpack.c.l.b16 %v478
      %v518 = vunpack.c.l.b16 %v479
      %v519 = vunpack.c.l.b16 %v480
      %v520 = vunpack.c.l.b16 %v481
      %v521 = vunpack.c.l.b16 %v482
      %v522 = vunpack.c.l.b16 %v483
      %v523 = vunpack.c.l.b16 %v484
      %v524 = vpack.c.b16 %v509, %v508
      %v525 = vpack.c.b16 %v511, %v510
      %v526 = vpack.c.b16 %v513, %v512
      %v527 = vpack.c.b16 %v515, %v514
      %v528 = vpack.c.b16 %v517, %v516
      %v529 = vpack.c.b16 %v519, %v518
      %v530 = vpack.c.b16 %v521, %v520
      %v531 = vpack.c.b16 %v523, %v522
      %540 = vmatprep.subr.bf16.mxu0 0
      %541 = vmatpush1.bf16.msra.mxu0 %v524
      %542 = vmatprep.subr.bf16.mxu0 0
      %543 = vmatpush1.bf16.msra.mxu0 %v525
      %544 = vmatprep.subr.bf16.mxu0 0
      %545 = vmatpush1.bf16.msra.mxu0 %v526
      %546 = vmatprep.subr.bf16.mxu0 0
      %547 = vmatpush1.bf16.msra.mxu0 %v527
      %548 = vmatprep.subr.bf16.mxu0 0
      %549 = vmatpush1.bf16.msra.mxu0 %v528
      %550 = vmatprep.subr.bf16.mxu0 0
      %551 = vmatpush1.bf16.msra.mxu0 %v529
      %552 = vmatprep.subr.bf16.mxu0 0
      %553 = vmatpush1.bf16.msra.mxu0 %v530
      %554 = vmatprep.subr.bf16.mxu0 0
      %555 = vmatpush1.bf16.msra.mxu0 %v531
      %556 = vmatprep.subr.bf16.mxu0 0
      %557 = vmatpush1.bf16.msra.mxu0 0
      %558 = vmatprep.subr.bf16.mxu0 0
      %559 = vmatpush1.bf16.msra.mxu0 0
      %560 = vmatprep.subr.bf16.mxu0 0
      %561 = vmatpush1.bf16.msra.mxu0 0
      %562 = vmatprep.subr.bf16.mxu0 0
      %563 = vmatpush1.bf16.msra.mxu0 0
      %564 = vmatprep.subr.bf16.mxu0 0
      %565 = vmatpush1.bf16.msra.mxu0 0
      %566 = vmatprep.subr.bf16.mxu0 0
      %567 = vmatpush1.bf16.msra.mxu0 0
      %568 = vmatprep.subr.bf16.mxu0 0
      %569 = vmatpush1.bf16.msra.mxu0 0
      %570 = vmatprep.subr.bf16.mxu0 0
      %571 = vmatpush1.bf16.msra.mxu0 0
      %572 = vmatprep.mubr.bf16.mxu0 0
      %573 = vmatmul.mubr.bf16.gmra.mrb[0].mxu0 %v490
      %v574 = vpop.f32.mrb[0].mxu0
      %v575 = vadd.f32 0.0, %v574
      %v576 = vpop.f32.mrb[0].mxu0
      %v577 = vpop.f32.mrb[0].mxu0
      %v578 = vadd.f32 0.0, %v577
      %v579 = vpop.f32.mrb[0].mxu0
      %580 = vdwg.mxu0
      %v581 = vadd.f32 %v462, %v575
      %v582 = vadd.f32 %v465, %v578
      %v583 = vld [vmem:[%s2] sm:$0x1]
      %v585 = vlaneseq
      %v586 = vshrl.u32 %v585, 7
      %v587 = vsub.s32 0, %v586
      %v588 = vrot.slane %v583, %v587
      %v590 = vadd.f32 %v581, %v588
      %v591 = vadd.f32 %v582, %v588
      %v592 = vmax.f32 %v590, 0.0
      %v593 = vmax.f32 %v591, 0.0
      %v594 = vpack.c.bf16 %v593, %v592
      %v596 = vshrl.u32 %v594, 16
      %v598 = vrot.slane %v596, 7
      %v599 = vshll.u32 %v594, 16
      %v601 = vor.u32 %v598, %v599
      %v604 = vsel %vm240, 0, %v601
      %v605 = vsel %vm240, %v598, 0
      %v606 = vld [vmem:[%s3] sm:$0xf]
      %v607 = vld [vmem:[%s3 + $0x4] sm:$0xf]
      %v608 = vld [vmem:[%s3 + $0x8] sm:$0xf]
      %v609 = vld [vmem:[%s3 + $0xc] sm:$0xf]
      %v610 = vld [vmem:[%s3 + $0x10] sm:$0xf]
      %v611 = vld [vmem:[%s3 + $0x14] sm:$0xf]
      %v612 = vld [vmem:[%s3 + $0x18] sm:$0xf]
      %v613 = vld [vmem:[%s3 + $0x1c] sm:$0xf]
      %v614 = vld [vmem:[%s3 + $0x20] sm:$0xf]
      %v615 = vld [vmem:[%s3 + $0x24] sm:$0xf]
      %v616 = vld [vmem:[%s3 + $0x28] sm:$0xf]
      %v617 = vld [vmem:[%s3 + $0x2c] sm:$0xf]
      %v618 = vld [vmem:[%s3 + $0x30] sm:$0xf]
      %v619 = vld [vmem:[%s3 + $0x34] sm:$0xf]
      %v620 = vld [vmem:[%s3 + $0x38] sm:$0xf]
      %v621 = vld [vmem:[%s3 + $0x3c] sm:$0xf]
      %s622 = scalar_lea.vmem %s3, 64
      %v623 = vld [vmem:[%s622] sm:$0xf]
      %v624 = vld [vmem:[%s622 + $0x4] sm:$0xf]
      %v625 = vld [vmem:[%s622 + $0x8] sm:$0xf]
      %v626 = vld [vmem:[%s622 + $0xc] sm:$0xf]
      %v627 = vld [vmem:[%s622 + $0x10] sm:$0xf]
      %v628 = vld [vmem:[%s622 + $0x14] sm:$0xf]
      %v629 = vld [vmem:[%s622 + $0x18] sm:$0xf]
      %v630 = vld [vmem:[%s622 + $0x1c] sm:$0xf]
      %v631 = vld [vmem:[%s622 + $0x20] sm:$0xf]
      %v632 = vld [vmem:[%s622 + $0x24] sm:$0xf]
      %v633 = vld [vmem:[%s622 + $0x28] sm:$0xf]
      %v634 = vld [vmem:[%s622 + $0x2c] sm:$0xf]
      %v635 = vld [vmem:[%s622 + $0x30] sm:$0xf]
      %v636 = vld [vmem:[%s622 + $0x34] sm:$0xf]
      %v637 = vld [vmem:[%s622 + $0x38] sm:$0xf]
      %v638 = vld [vmem:[%s622 + $0x3c] sm:$0xf]
      %v640 = vshrl.u32 %v604, 16
      %v642 = vshll.u32 %v604, 16
      %v644 = vrot.slane %v642, 1
      %v645 = vor.u32 %v640, %v644
      %v647 = vshll.u32 %v605, 16
      %v649 = vrot.slane %v647, 1
      %v650 = vsel %vm276, %v645, %v649
      %v668 = vunpack.c.l.b16 %v623
      %v669 = vunpack.c.l.b16 %v624
      %v670 = vunpack.c.l.b16 %v625
      %v671 = vunpack.c.l.b16 %v626
      %v672 = vunpack.c.l.b16 %v627
      %v673 = vunpack.c.l.b16 %v628
      %v674 = vunpack.c.l.b16 %v629
      %v675 = vunpack.c.l.b16 %v630
      %v676 = vunpack.c.l.b16 %v631
      %v677 = vunpack.c.l.b16 %v632
      %v678 = vunpack.c.l.b16 %v633
      %v679 = vunpack.c.l.b16 %v634
      %v680 = vunpack.c.l.b16 %v635
      %v681 = vunpack.c.l.b16 %v636
      %v682 = vunpack.c.l.b16 %v637
      %v683 = vunpack.c.l.b16 %v638
      %v684 = vpack.c.b16 %v669, %v668
      %v685 = vpack.c.b16 %v671, %v670
      %v686 = vpack.c.b16 %v673, %v672
      %v687 = vpack.c.b16 %v675, %v674
      %v688 = vpack.c.b16 %v677, %v676
      %v689 = vpack.c.b16 %v679, %v678
      %v690 = vpack.c.b16 %v681, %v680
      %v691 = vpack.c.b16 %v683, %v682
      %700 = vmatprep.subr.bf16.mxu0 0
      %701 = vmatpush1.bf16.msra.mxu0 %v684
      %702 = vmatprep.subr.bf16.mxu0 0
      %703 = vmatpush1.bf16.msra.mxu0 %v685
      %704 = vmatprep.subr.bf16.mxu0 0
      %705 = vmatpush1.bf16.msra.mxu0 %v686
      %706 = vmatprep.subr.bf16.mxu0 0
      %707 = vmatpush1.bf16.msra.mxu0 %v687
      %708 = vmatprep.subr.bf16.mxu0 0
      %709 = vmatpush1.bf16.msra.mxu0 %v688
      %710 = vmatprep.subr.bf16.mxu0 0
      %711 = vmatpush1.bf16.msra.mxu0 %v689
      %712 = vmatprep.subr.bf16.mxu0 0
      %713 = vmatpush1.bf16.msra.mxu0 %v690
      %714 = vmatprep.subr.bf16.mxu0 0
      %715 = vmatpush1.bf16.msra.mxu0 %v691
      %716 = vmatprep.subr.bf16.mxu0 0
      %717 = vmatpush1.bf16.msra.mxu0 0
      %718 = vmatprep.subr.bf16.mxu0 0
      %719 = vmatpush1.bf16.msra.mxu0 0
      %720 = vmatprep.subr.bf16.mxu0 0
      %721 = vmatpush1.bf16.msra.mxu0 0
      %722 = vmatprep.subr.bf16.mxu0 0
      %723 = vmatpush1.bf16.msra.mxu0 0
      %724 = vmatprep.subr.bf16.mxu0 0
      %725 = vmatpush1.bf16.msra.mxu0 0
      %726 = vmatprep.subr.bf16.mxu0 0
      %727 = vmatpush1.bf16.msra.mxu0 0
      %728 = vmatprep.subr.bf16.mxu0 0
      %729 = vmatpush1.bf16.msra.mxu0 0
      %730 = vmatprep.subr.bf16.mxu0 0
      %731 = vmatpush1.bf16.msra.mxu0 0
      %732 = vmatprep.mubr.bf16.mxu0 0
      %733 = vmatmul.mubr.bf16.gmra.mrb[0].mxu0 %v650
      %v734 = vpop.f32.mrb[0].mxu0
      %v735 = vadd.f32 0.0, %v734
      %v736 = vpop.f32.mrb[0].mxu0
      %v737 = vpop.f32.mrb[0].mxu0
      %v738 = vadd.f32 0.0, %v737
      %v739 = vpop.f32.mrb[0].mxu0
      %740 = vdwg.mxu0
      %v757 = vunpack.c.l.b16 %v606
      %v758 = vunpack.c.l.b16 %v607
      %v759 = vunpack.c.l.b16 %v608
      %v760 = vunpack.c.l.b16 %v609
      %v761 = vunpack.c.l.b16 %v610
      %v762 = vunpack.c.l.b16 %v611
      %v763 = vunpack.c.l.b16 %v612
      %v764 = vunpack.c.l.b16 %v613
      %v765 = vunpack.c.l.b16 %v614
      %v766 = vunpack.c.l.b16 %v615
      %v767 = vunpack.c.l.b16 %v616
      %v768 = vunpack.c.l.b16 %v617
      %v769 = vunpack.c.l.b16 %v618
      %v770 = vunpack.c.l.b16 %v619
      %v771 = vunpack.c.l.b16 %v620
      %v772 = vunpack.c.l.b16 %v621
      %v773 = vpack.c.b16 %v758, %v757
      %v774 = vpack.c.b16 %v760, %v759
      %v775 = vpack.c.b16 %v762, %v761
      %v776 = vpack.c.b16 %v764, %v763
      %v777 = vpack.c.b16 %v766, %v765
      %v778 = vpack.c.b16 %v768, %v767
      %v779 = vpack.c.b16 %v770, %v769
      %v780 = vpack.c.b16 %v772, %v771
      %789 = vmatprep.subr.bf16.mxu0 0
      %790 = vmatpush1.bf16.msra.mxu0 %v773
      %791 = vmatprep.subr.bf16.mxu0 0
      %792 = vmatpush1.bf16.msra.mxu0 %v774
      %793 = vmatprep.subr.bf16.mxu0 0
      %794 = vmatpush1.bf16.msra.mxu0 %v775
      %795 = vmatprep.subr.bf16.mxu0 0
      %796 = vmatpush1.bf16.msra.mxu0 %v776
      %797 = vmatprep.subr.bf16.mxu0 0
      %798 = vmatpush1.bf16.msra.mxu0 %v777
      %799 = vmatprep.subr.bf16.mxu0 0
      %800 = vmatpush1.bf16.msra.mxu0 %v778
      %801 = vmatprep.subr.bf16.mxu0 0
      %802 = vmatpush1.bf16.msra.mxu0 %v779
      %803 = vmatprep.subr.bf16.mxu0 0
      %804 = vmatpush1.bf16.msra.mxu0 %v780
      %805 = vmatprep.subr.bf16.mxu0 0
      %806 = vmatpush1.bf16.msra.mxu0 0
      %807 = vmatprep.subr.bf16.mxu0 0
      %808 = vmatpush1.bf16.msra.mxu0 0
      %809 = vmatprep.subr.bf16.mxu0 0
      %810 = vmatpush1.bf16.msra.mxu0 0
      %811 = vmatprep.subr.bf16.mxu0 0
      %812 = vmatpush1.bf16.msra.mxu0 0
      %813 = vmatprep.subr.bf16.mxu0 0
      %814 = vmatpush1.bf16.msra.mxu0 0
      %815 = vmatprep.subr.bf16.mxu0 0
      %816 = vmatpush1.bf16.msra.mxu0 0
      %817 = vmatprep.subr.bf16.mxu0 0
      %818 = vmatpush1.bf16.msra.mxu0 0
      %819 = vmatprep.subr.bf16.mxu0 0
      %820 = vmatpush1.bf16.msra.mxu0 0
      %821 = vmatprep.mubr.bf16.mxu0 0
      %822 = vmatmul.mubr.bf16.gmra.mrb[0].mxu0 %v604
      %v823 = vpop.f32.mrb[0].mxu0
      %v824 = vadd.f32 %v735, %v823
      %v825 = vpop.f32.mrb[0].mxu0
      %v826 = vpop.f32.mrb[0].mxu0
      %v827 = vadd.f32 %v738, %v826
      %v828 = vpop.f32.mrb[0].mxu0
      %829 = vdwg.mxu0
      %s830 = scalar_lea.vmem %s3, 128
      %v831 = vld [vmem:[%s830] sm:$0xf]
      %v832 = vld [vmem:[%s830 + $0x4] sm:$0xf]
      %v833 = vld [vmem:[%s830 + $0x8] sm:$0xf]
      %v834 = vld [vmem:[%s830 + $0xc] sm:$0xf]
      %v835 = vld [vmem:[%s830 + $0x10] sm:$0xf]
      %v836 = vld [vmem:[%s830 + $0x14] sm:$0xf]
      %v837 = vld [vmem:[%s830 + $0x18] sm:$0xf]
      %v838 = vld [vmem:[%s830 + $0x1c] sm:$0xf]
      %v839 = vld [vmem:[%s830 + $0x20] sm:$0xf]
      %v840 = vld [vmem:[%s830 + $0x24] sm:$0xf]
      %v841 = vld [vmem:[%s830 + $0x28] sm:$0xf]
      %v842 = vld [vmem:[%s830 + $0x2c] sm:$0xf]
      %v843 = vld [vmem:[%s830 + $0x30] sm:$0xf]
      %v844 = vld [vmem:[%s830 + $0x34] sm:$0xf]
      %v845 = vld [vmem:[%s830 + $0x38] sm:$0xf]
      %v846 = vld [vmem:[%s830 + $0x3c] sm:$0xf]
      %v849 = vrot.slane %v604, 1
      %v850 = vrot.slane %v605, 1
      %v851 = vsel %vm487, %v849, %v850
      %v869 = vunpack.c.l.b16 %v831
      %v870 = vunpack.c.l.b16 %v832
      %v871 = vunpack.c.l.b16 %v833
      %v872 = vunpack.c.l.b16 %v834
      %v873 = vunpack.c.l.b16 %v835
      %v874 = vunpack.c.l.b16 %v836
      %v875 = vunpack.c.l.b16 %v837
      %v876 = vunpack.c.l.b16 %v838
      %v877 = vunpack.c.l.b16 %v839
      %v878 = vunpack.c.l.b16 %v840
      %v879 = vunpack.c.l.b16 %v841
      %v880 = vunpack.c.l.b16 %v842
      %v881 = vunpack.c.l.b16 %v843
      %v882 = vunpack.c.l.b16 %v844
      %v883 = vunpack.c.l.b16 %v845
      %v884 = vunpack.c.l.b16 %v846
      %v885 = vpack.c.b16 %v870, %v869
      %v886 = vpack.c.b16 %v872, %v871
      %v887 = vpack.c.b16 %v874, %v873
      %v888 = vpack.c.b16 %v876, %v875
      %v889 = vpack.c.b16 %v878, %v877
      %v890 = vpack.c.b16 %v880, %v879
      %v891 = vpack.c.b16 %v882, %v881
      %v892 = vpack.c.b16 %v884, %v883
      %901 = vmatprep.subr.bf16.mxu0 0
      %902 = vmatpush1.bf16.msra.mxu0 %v885
      %903 = vmatprep.subr.bf16.mxu0 0
      %904 = vmatpush1.bf16.msra.mxu0 %v886
      %905 = vmatprep.subr.bf16.mxu0 0
      %906 = vmatpush1.bf16.msra.mxu0 %v887
      %907 = vmatprep.subr.bf16.mxu0 0
      %908 = vmatpush1.bf16.msra.mxu0 %v888
      %909 = vmatprep.subr.bf16.mxu0 0
      %910 = vmatpush1.bf16.msra.mxu0 %v889
      %911 = vmatprep.subr.bf16.mxu0 0
      %912 = vmatpush1.bf16.msra.mxu0 %v890
      %913 = vmatprep.subr.bf16.mxu0 0
      %914 = vmatpush1.bf16.msra.mxu0 %v891
      %915 = vmatprep.subr.bf16.mxu0 0
      %916 = vmatpush1.bf16.msra.mxu0 %v892
      %917 = vmatprep.subr.bf16.mxu0 0
      %918 = vmatpush1.bf16.msra.mxu0 0
      %919 = vmatprep.subr.bf16.mxu0 0
      %920 = vmatpush1.bf16.msra.mxu0 0
      %921 = vmatprep.subr.bf16.mxu0 0
      %922 = vmatpush1.bf16.msra.mxu0 0
      %923 = vmatprep.subr.bf16.mxu0 0
      %924 = vmatpush1.bf16.msra.mxu0 0
      %925 = vmatprep.subr.bf16.mxu0 0
      %926 = vmatpush1.bf16.msra.mxu0 0
      %927 = vmatprep.subr.bf16.mxu0 0
      %928 = vmatpush1.bf16.msra.mxu0 0
      %929 = vmatprep.subr.bf16.mxu0 0
      %930 = vmatpush1.bf16.msra.mxu0 0
      %931 = vmatprep.subr.bf16.mxu0 0
      %932 = vmatpush1.bf16.msra.mxu0 0
      %933 = vmatprep.mubr.bf16.mxu0 0
      %934 = vmatmul.mubr.bf16.gmra.mrb[0].mxu0 %v851
      %v935 = vpop.f32.mrb[0].mxu0
      %v936 = vadd.f32 0.0, %v935
      %v937 = vpop.f32.mrb[0].mxu0
      %v938 = vpop.f32.mrb[0].mxu0
      %v939 = vadd.f32 0.0, %v938
      %v940 = vpop.f32.mrb[0].mxu0
      %941 = vdwg.mxu0
      %v942 = vadd.f32 %v824, %v936
      %v943 = vadd.f32 %v827, %v939
      %v944 = vld [vmem:[%s4] sm:$0x1]
      %v946 = vlaneseq
      %v947 = vshrl.u32 %v946, 7
      %v948 = vsub.s32 0, %v947
      %v949 = vrot.slane %v944, %v948
      %v951 = vadd.f32 %v942, %v949
      %v952 = vadd.f32 %v943, %v949
      %v953 = vadd.f32 %v951, %v226
      %v954 = vadd.f32 %v952, %v227
      %955 = vst [vmem:[%s224] sm:$0xff] %v953
      %956 = vst [vmem:[%s224 + $0x8] sm:$0xff] %v954
      %p957 = scmp.lt.s32.totalorder %s16, 1
      %s958 = scalar_select %p957, %s16, 1
      %s959 = smul.addr %s958, 2
      %s960 = smul.addr %s959, 8
      %s961 = scalar_lea.vmem %s5, %s960
      // Predicated region
      $region41: #{basic_block_forward.1} parent=39 // pred_check
        %p962 = pneg %p144
      $region42: #{basic_block_forward.1} parent=39 // pred_check_branch
        %964 = sbr.rel (%p962) target = $region44
      $region43: #{basic_block_forward.1} parent=39 // pred_region
        _
      $region44: #{basic_block_forward.1} parent=39 // pred_fallthru
        _
    $region40: #{basic_block_forward.1} parent=5 // pred_fallthru
      _
    %p965 = scmp.le.s32.totalorder 2, %s11
    // Predicated region
    $region45: #{basic_block_forward.1} parent=5 // pred_check
      %p966 = pneg %p965
    $region46: #{basic_block_forward.1} parent=5 // pred_check_branch
      %968 = sbr.rel (%p966) target = $region48
    $region47: #{basic_block_forward.1} parent=5 // pred_region
      %s969 = ssub.s32 %s11, 2
      // Predicated region
      $region49: #{basic_block_forward.1} parent=47 // pred_check
        %p970 = pneg %p150
      $region50: #{basic_block_forward.1} parent=47 // pred_check_branch
        %972 = sbr.rel (%p970) target = $region52
      $region51: #{basic_block_forward.1} parent=47 // pred_region
        %p973 = scmp.lt.s32.totalorder %s17, 1
        %s974 = scalar_select %p973, %s17, 1
        %s975 = smul.addr %s974, 2
        %s976 = smul.addr %s975, 8
        %s977 = scalar_lea.vmem %s5, %s976
      $region52: #{basic_block_forward.1} parent=47 // pred_fallthru
        _
    $region48: #{basic_block_forward.1} parent=5 // pred_fallthru
      _
  $region6: #{basic_block_forward.1} parent=0 // loop_footer
    %s15 = sadd.s32 1, %s11
  $region7: #{basic_block_forward.1} parent=0 // loop_footer_branch
    %10 = sbr.rel target = $region3
  $region8: #{basic_block_forward.1} parent=0 // loop_exit
    _

</llo_original>
